<compile_context>
chip_gen: v5e
topology: v5e:2x2
jax: 0.10.0
libtpu: 0.0.40
codegen_flags: <defaults>
</compile_context>

<pallas_src>
import functools

import jax
import jax.numpy as jnp
from jax import lax
from jax.experimental import pallas as pl
from jax.experimental.pallas import tpu as pltpu

SMOOTHING = 0.35
CONFIDENCE = 1.0 - SMOOTHING
SMOOTH_BIAS = 0.03571 * SMOOTHING      # matches the module's hardcoded 0.03571
LANES = 128
SUBLANES = 8


def _bce_ls_kernel(x_ref, t_ref, o_ref, *, n_total, tile_rows, steps_per_slice,
                   may_need_mask):
    c = pl.program_id(0)           # "parallel" slice (one per TensorCore on v7x)
    s = pl.program_id(1)           # "arbitrary" reduction step within the slice

    @pl.when(s == 0)
    def _init():
        o_ref[...] = jnp.zeros_like(o_ref)

    x = x_ref[...].astype(jnp.float32)
    t = t_ref[...].astype(jnp.float32) * CONFIDENCE + SMOOTH_BIAS

    # numerically stable BCE-with-logits (same form PyTorch uses)
    loss = jnp.maximum(x, 0.0) - x * t + jnp.log1p(jnp.exp(-jnp.abs(x)))

    def _accumulate(vals):
        # vreg-wise VPU reduction to one (8, 128) tile; output block is the
        # resident accumulator (4 KiB load+store per step only).
        part = vals.reshape(tile_rows // SUBLANES, SUBLANES, LANES).sum(axis=0)
        o_ref[...] += part[None]

    if may_need_mask:
        tile_elems = tile_rows * LANES
        tile_start = (c * steps_per_slice + s) * tile_elems
        is_tail = tile_start + tile_elems > n_total

        @pl.when(jnp.logical_not(is_tail))
        def _steady():
            _accumulate(loss)

        @pl.when(is_tail)
        def _tail():
            # select (not multiply): padded/garbage lanes may be inf/NaN.
            row = lax.broadcasted_iota(jnp.int32, (tile_rows, LANES), 0)
            col = lax.broadcasted_iota(jnp.int32, (tile_rows, LANES), 1)
            local = row * LANES + col
            _accumulate(jnp.where(local < n_total - tile_start, loss, 0.0))
    else:
        _accumulate(loss)


def label_smoothing_cross_entropy(x, target, *, tile_rows=2048):
    """x, target: same shape (any rank). Returns the scalar f32 mean BCE loss."""
    n_total = int(x.size)
    assert n_total > 0

    # Lane-dense view: rows x 128. Keep rows >= 8 so tiles are sublane-aligned.
    rows = max(-(-n_total // LANES), SUBLANES)
    n_view = rows * LANES

    xf = x.reshape(-1)
    tf = target.reshape(-1)            # keep target dtype; upcast to f32 in-kernel
    if n_view != n_total:
        # Only fires when n % 128 != 0 or n < 1024; padded tail is masked in-kernel.
        pad = n_view - n_total
        xf = jnp.pad(xf, (0, pad))
        tf = jnp.pad(tf, (0, pad))
    x2 = xf.reshape(rows, LANES)
    t2 = tf.reshape(rows, LANES)

    # Tile rows: multiple of 8, never larger than the array (last block may be ragged).
    tr = min(tile_rows, rows)
    tr = max(SUBLANES, (tr // SUBLANES) * SUBLANES)

    num_tiles = -(-rows // tr)
    num_slices = min(2, num_tiles)                 # 2 -> both TensorCores on v7x
    steps_per_slice = -(-num_tiles // num_slices)

    # TODO(synk): tail-mask flat index is int32; guard against overflow.
    assert num_slices * steps_per_slice * tr * LANES < 2 ** 31

    exact = num_slices * steps_per_slice == num_tiles
    may_need_mask = (not exact) or (num_tiles * tr != rows) or (n_view != n_total)

    if exact:
        def in_map(c, s):
            return (c * steps_per_slice + s, 0)
    else:
        def in_map(c, s):
            # Clamp duplicated trailing steps to the last real tile; their
            # contribution is zeroed by the in-kernel mask.
            return (jnp.minimum(c * steps_per_slice + s, num_tiles - 1), 0)

    kernel = functools.partial(
        _bce_ls_kernel,
        n_total=n_total,
        tile_rows=tr,
        steps_per_slice=steps_per_slice,
        may_need_mask=may_need_mask,
    )

    partials = pl.pallas_call(
        kernel,
        out_shape=jax.ShapeDtypeStruct((num_slices, SUBLANES, LANES), jnp.float32),
        grid_spec=pltpu.PrefetchScalarGridSpec(
            num_scalar_prefetch=0,
            grid=(num_slices, steps_per_slice),
            in_specs=[
                pl.BlockSpec((tr, LANES), in_map),
                pl.BlockSpec((tr, LANES), in_map),
            ],
            # Per-slice resident accumulator block; distinct block per parallel slice.
            out_specs=pl.BlockSpec((1, SUBLANES, LANES), lambda c, s: (c, 0, 0)),
        ),
        compiler_params=pltpu.CompilerParams(
            dimension_semantics=("parallel", "arbitrary"),
            vmem_limit_bytes=32 * 1024 * 1024,
        ),
    )(x2, t2)

    # Tiny final reduction (<= 2*8*128 f32) + mean scaling outside the kernel.
    return jnp.sum(partials) * (1.0 / float(n_total))


def _reference(x, target):
    t = target.astype(jnp.float32) * CONFIDENCE + SMOOTH_BIAS
    xf = x.astype(jnp.float32)
    loss = jnp.maximum(xf, 0.0) - xf * t + jnp.log1p(jnp.exp(-jnp.abs(xf)))
    return jnp.mean(loss)


if __name__ == "__main__":
    key = jax.random.PRNGKey(0)
    kx, kt = jax.random.split(key)

    # NCHW logits, binary {0,1} targets of the same shape.
    x = jax.random.normal(kx, (2, 4, 16, 16), dtype=jnp.float32)
    target = jax.random.bernoulli(kt, 0.5, (2, 4, 16, 16)).astype(jnp.float32)

    loss = label_smoothing_cross_entropy(x, target)
    jax.block_until_ready(loss)

    ref = _reference(x, target)
    assert jnp.allclose(loss, ref, atol=1e-5, rtol=1e-5), (loss, ref)

    print("KERNEL_OK")
</pallas_src>

<mosaic_0001>
module attributes {stable_mosaic.version = 11 : i64} {
  func.func @_bce_ls_kernel(%arg0: i32, %arg1: i32, %arg2: memref<16x128xf32, #tpu.memory_space<vmem>>, %arg3: memref<16x128xf32, #tpu.memory_space<vmem>>, %arg4: memref<1x8x128xf32, #tpu.memory_space<vmem>>) attributes {dimension_semantics = [#tpu.dimension_semantics<parallel>, #tpu.dimension_semantics<arbitrary>], iteration_bounds = array<i64: 1, 1>, scalar_prefetch = 0 : i64, scratch_operands = 0 : i64, tpu.core_type = #tpu.core_type<tc>, window_params = [{transform_indices = @transform_0, window_bounds = array<i64: 16, 128>}, {transform_indices = @transform_1, window_bounds = array<i64: 16, 128>}, {transform_indices = @transform_2, window_bounds = array<i64: 1, 8, 128>}]} {
    %c0_i32 = arith.constant 0 : i32
    %0 = arith.cmpi eq, %arg1, %c0_i32 : i32
    %1 = arith.extui %0 : i1 to i32
    %c0_i32_0 = arith.constant 0 : i32
    %2 = arith.cmpi ne, %1, %c0_i32_0 : i32
    scf.if %2 {
      %cst_14 = arith.constant 0.000000e+00 : f32
      %25 = vector.broadcast %cst_14 : f32 to vector<1x8x128xf32>
      %c0_15 = arith.constant 0 : index
      %c0_16 = arith.constant 0 : index
      %c0_17 = arith.constant 0 : index
      %26 = vector.load %arg4[%c0_15, %c0_16, %c0_17] : memref<1x8x128xf32, #tpu.memory_space<vmem>>, vector<1x8x128xf32>
      tpu.vector_store %arg4[%c0_15, %c0_16, %c0_17], %25 {strides = array<i32>} : memref<1x8x128xf32, #tpu.memory_space<vmem>>, vector<1x8x128xf32>,
    } else {
    }
    %c0 = arith.constant 0 : index
    %c0_1 = arith.constant 0 : index
    %3 = vector.load %arg2[%c0, %c0_1] : memref<16x128xf32, #tpu.memory_space<vmem>>, vector<16x128xf32>
    %c0_2 = arith.constant 0 : index
    %c0_3 = arith.constant 0 : index
    %4 = vector.load %arg3[%c0_2, %c0_3] : memref<16x128xf32, #tpu.memory_space<vmem>>, vector<16x128xf32>
    %cst = arith.constant 6.500000e-01 : f32
    %5 = vector.broadcast %cst : f32 to vector<16x128xf32>
    %6 = arith.mulf %4, %5 : vector<16x128xf32>
    %cst_4 = arith.constant 1.249850e-02 : f32
    %7 = vector.broadcast %cst_4 : f32 to vector<16x128xf32>
    %8 = arith.addf %6, %7 : vector<16x128xf32>
    %cst_5 = arith.constant 0.000000e+00 : f32
    %9 = vector.broadcast %cst_5 : f32 to vector<16x128xf32>
    %10 = arith.maximumf %3, %9 : vector<16x128xf32>
    %11 = arith.mulf %3, %8 : vector<16x128xf32>
    %12 = arith.subf %10, %11 : vector<16x128xf32>
    %13 = math.absf %3 : vector<16x128xf32>
    %cst_6 = arith.constant 0.000000e+00 : f32
    %14 = vector.broadcast %cst_6 : f32 to vector<16x128xf32>
    %15 = arith.subf %14, %13 : vector<16x128xf32>
    %16 = math.exp %15 : vector<16x128xf32>
    %17 = math.log1p %16 : vector<16x128xf32>
    %18 = arith.addf %12, %17 : vector<16x128xf32>
    %19 = vector.shape_cast %18 : vector<16x128xf32> to vector<2x8x128xf32>
    %cst_7 = arith.constant dense<0.000000e+00> : vector<8x128xf32>
    %20 = vector.multi_reduction <add>, %19, %cst_7 [0] : vector<2x8x128xf32> to vector<8x128xf32>
    %c0_8 = arith.constant 0 : index
    %c0_9 = arith.constant 0 : index
    %c0_10 = arith.constant 0 : index
    %21 = vector.load %arg4[%c0_8, %c0_9, %c0_10] : memref<1x8x128xf32, #tpu.memory_space<vmem>>, vector<1x8x128xf32>
    %22 = vector.shape_cast %20 : vector<8x128xf32> to vector<1x8x128xf32>
    %23 = arith.addf %21, %22 : vector<1x8x128xf32>
    %c0_11 = arith.constant 0 : index
    %c0_12 = arith.constant 0 : index
    %c0_13 = arith.constant 0 : index
    %24 = vector.load %arg4[%c0_11, %c0_12, %c0_13] : memref<1x8x128xf32, #tpu.memory_space<vmem>>, vector<1x8x128xf32>
    tpu.vector_store %arg4[%c0_11, %c0_12, %c0_13], %23 {strides = array<i32>} : memref<1x8x128xf32, #tpu.memory_space<vmem>>, vector<1x8x128xf32>,
    return
  }
  func.func @transform_0(%arg0: i32, %arg1: i32) -> (i32, i32) {
    %c1_i32 = arith.constant 1 : i32
    %0 = arith.muli %arg0, %c1_i32 : i32
    %1 = arith.addi %0, %arg1 : i32
    %c0_i32 = arith.constant 0 : i32
    %c0_i32_0 = arith.constant 0 : i32
    return %1, %c0_i32 : i32, i32
  }
  func.func @transform_1(%arg0: i32, %arg1: i32) -> (i32, i32) {
    %c1_i32 = arith.constant 1 : i32
    %0 = arith.muli %arg0, %c1_i32 : i32
    %1 = arith.addi %0, %arg1 : i32
    %c0_i32 = arith.constant 0 : i32
    %c0_i32_0 = arith.constant 0 : i32
    return %1, %c0_i32 : i32, i32
  }
  func.func @transform_2(%arg0: i32, %arg1: i32) -> (i32, i32, i32) {
    %c0_i32 = arith.constant 0 : i32
    %c0_i32_0 = arith.constant 0 : i32
    %c0_i32_1 = arith.constant 0 : i32
    return %arg0, %c0_i32, %c0_i32_0 : i32, i32, i32
  }
}

</mosaic_0001>

<llo_original>
// kernel: tpu_custom_call.1
$region0: #{tpu_custom_call.1}
  #allocation0 [shape = 'u32[]', space=smem, size = 0x4, offset = 0x4, fixed_abs, tag = 'smem constant byte address 0x4 - core index']
  #allocation1 [shape = 'u32[72,128]{1,0:T(1,128)}', space=vmem, size = 0x9000, scoped, tag = 'internal scratch']
  %s0 = inlined_call_operand.hbm [shape: f32[16,128], index: 0, kind: input, shape index: {}]
  %s1 = inlined_call_operand.hbm [shape: f32[16,128], index: 1, kind: input, shape index: {}]
  %s2 = inlined_call_operand.hbm [shape: f32[1,8,128], index: 2, kind: output, shape index: {}]
  %s3 = sld [smem:[#allocation0]]
  $region30: #{tpu_custom_call.1} parent=0
    _
  %s5 = ssub.s32 1, %s3
  %s6 = scalar_select 0, %s5, %s3
  $region1: #{tpu_custom_call.1} parent=0
    #allocation2 [shape = 'u8[8192]{0}', space=vmem, size = 0x2000, scoped, tag = 'input window, operand 0, single buffered']
    #allocation3 [shape = 's32[1]{0}', space=sflag, size = 0x4, scoped, tag = 'scoped memory for tpu_custom_call.1']
    #allocation4 [shape = 's32[1]{0}', space=sflag, size = 0x4, scoped, tag = 'scoped memory for tpu_custom_call.1']
    #allocation5 [shape = 'u8[8192]{0}', space=vmem, size = 0x2000, scoped, tag = 'input window, operand 1, single buffered']
    #allocation6 [shape = 's32[1]{0}', space=sflag, size = 0x4, scoped, tag = 'scoped memory for tpu_custom_call.1']
    #allocation7 [shape = 'u8[4096]{0}', space=vmem, size = 0x1000, scoped, tag = 'output window, operand 0, single buffered']
    %7 = vsyncpa [#allocation3], 0
    %8 = vsyncpa [#allocation6], 0
    %9 = vsyncpa [#allocation4], 0
    // Predicated region
    $region2: #{tpu_custom_call.1} parent=1 // pred_check
      _
    $region3: #{tpu_custom_call.1} parent=1 // pred_check_branch
      %11 = sbr.rel (0) target = $region5
    $region4: #{tpu_custom_call.1} parent=1 // pred_region
      %s12 = sadd.s32 0, 0
      %s13 = smul.u32 2, %s12
      %15 = vsyncadd [#allocation3], 0
      %s16 = smul.addr %s13, 8
      %s17 = scalar_lea.hbm %s0, %s16
      %s18 = sshll.u32 %s17, 4
      %s19 = int_to_ptr.hbm [resolvable:$true] %s18
      %s20 = sshll.u32 [#allocation2], 4
      %s21 = int_to_ptr.vmem [resolvable:$true] %s20
      %26 = dma.hbm_to_vmem [thread:$0]  %s19, 256, %s21, [#allocation3], 128, 128, 8
    $region5: #{tpu_custom_call.1} parent=1 // pred_fallthru
      _
    // Predicated region
    $region6: #{tpu_custom_call.1} parent=1 // pred_check
      _
    $region7: #{tpu_custom_call.1} parent=1 // pred_check_branch
      %28 = sbr.rel (0) target = $region9
    $region8: #{tpu_custom_call.1} parent=1 // pred_region
      %s29 = sadd.s32 0, 0
      %s30 = smul.u32 2, %s29
      %32 = vsyncadd [#allocation6], 0
      %s33 = smul.addr %s30, 8
      %s34 = scalar_lea.hbm %s1, %s33
      %s35 = sshll.u32 %s34, 4
      %s36 = int_to_ptr.hbm [resolvable:$true] %s35
      %s37 = sshll.u32 [#allocation5], 4
      %s38 = int_to_ptr.vmem [resolvable:$true] %s37
      %43 = dma.hbm_to_vmem [thread:$0]  %s36, 256, %s38, [#allocation6], 128, 128, 8
    $region9: #{tpu_custom_call.1} parent=1 // pred_fallthru
      _
    // Predicated region
    $region10: #{tpu_custom_call.1} parent=1 // pred_check
      _
    $region11: #{tpu_custom_call.1} parent=1 // pred_check_branch
      %45 = sbr.rel (0) target = $region13
    $region12: #{tpu_custom_call.1} parent=1 // pred_region
      %47 = dma.done [#allocation3], 256
    $region13: #{tpu_custom_call.1} parent=1 // pred_fallthru
      _
    // Predicated region
    $region14: #{tpu_custom_call.1} parent=1 // pred_check
      _
    $region15: #{tpu_custom_call.1} parent=1 // pred_check_branch
      %49 = sbr.rel (0) target = $region17
    $region16: #{tpu_custom_call.1} parent=1 // pred_region
      %51 = dma.done [#allocation6], 256
    $region17: #{tpu_custom_call.1} parent=1 // pred_fallthru
      _
    %s52 = sadd.s32 0, 0
    %s53 = smul.u32 2, %s52
    %s54 = sadd.s32 0, 0
    %s55 = smul.u32 2, %s54
    %p56 = scmp.eq.s32.totalorder 0, 0
    // Predicated region
    $region18: #{tpu_custom_call.1} parent=1 // pred_check
      %p57 = pneg %p56
    $region19: #{tpu_custom_call.1} parent=1 // pred_check_branch
      %59 = sbr.rel (%p57) target = $region21
    $region20: #{tpu_custom_call.1} parent=1 // pred_region
      %60 = vst [vmem:[#allocation7] sm:$0xff] 0.0
    $region21: #{tpu_custom_call.1} parent=1 // pred_fallthru
      _
    %v61 = vld [vmem:[#allocation2] sm:$0xff]
    %v62 = vld [vmem:[#allocation2 + $0x8] sm:$0xff]
    %v63 = vld [vmem:[#allocation5] sm:$0xff]
    %v64 = vld [vmem:[#allocation5 + $0x8] sm:$0xff]
    %v65 = vmul.f32 %v63, 0.65
    %v66 = vmul.f32 %v64, 0.65
    %v67 = vadd.f32 %v65, 0.0124985
    %v68 = vadd.f32 %v66, 0.0124985
    %v69 = vmax.f32 %v61, 0.0
    %v70 = vmax.f32 %v62, 0.0
    %v71 = vmul.f32 %v61, %v67
    %v72 = vmul.f32 %v62, %v68
    %v73 = vsub.f32 %v69, %v71
    %v74 = vsub.f32 %v70, %v72
    %v75 = vand.u32 2147483647, %v61
    %v76 = vand.u32 2147483647, %v62
    %v77 = vsub.f32 0.0, %v75
    %v78 = vsub.f32 0.0, %v76
    %v79 = vmul.f32 %v77, 1.442695
    %v80 = vpow.pop %v79
    %v81 = vmul.f32 %v78, 1.442695
    %v82 = vpow.pop %v81
    %v83 = vadd.f32 %v80, 1.0
    %v84 = vlog2.pop %v83
    %v85 = vmul.f32 %v84, 0.6931472
    %v86 = vmul.f32 -0.5, %v80
    %v87 = vadd.f32 %v86, 1.0
    %v88 = vmul.f32 %v87, %v80
    %v89 = vand.u32 2147483647, %v80
    %vm90 = vcmp.lt.f32.partialorder %v89, 0.0004427343
    %v91 = vsel %vm90, %v88, %v85
    %v92 = vadd.f32 %v82, 1.0
    %v93 = vlog2.pop %v92
    %v94 = vmul.f32 %v93, 0.6931472
    %v95 = vmul.f32 -0.5, %v82
    %v96 = vadd.f32 %v95, 1.0
    %v97 = vmul.f32 %v96, %v82
    %v98 = vand.u32 2147483647, %v82
    %vm99 = vcmp.lt.f32.partialorder %v98, 0.0004427343
    %v100 = vsel %vm99, %v97, %v94
    %v101 = vadd.f32 %v73, %v91
    %v102 = vadd.f32 %v74, %v100
    %v103 = vadd.f32 %v101, %v102
    %v104 = vld [vmem:[#allocation7] sm:$0xff]
    %v105 = vadd.f32 %v104, %v103
    %106 = vst [vmem:[#allocation7] sm:$0xff] %v105
    // Predicated region
    $region22: #{tpu_custom_call.1} parent=1 // pred_check
      _
    $region23: #{tpu_custom_call.1} parent=1 // pred_check_branch
      %108 = sbr.rel (0) target = $region25
    $region24: #{tpu_custom_call.1} parent=1 // pred_region
      %110 = vsyncadd [#allocation4], 0
      %s112 = sshll.u32 [#allocation7], 4
      %s113 = int_to_ptr.vmem [resolvable:$true] %s112
      %s114 = sshll.u32 %s2, 4
      %s115 = int_to_ptr.hbm [resolvable:$true] %s114
      %117 = dma.vmem_to_hbm [thread:$0]  %s113, 128, %s115, [#allocation4]
    $region25: #{tpu_custom_call.1} parent=1 // pred_fallthru
      _
    // Predicated region
    $region26: #{tpu_custom_call.1} parent=1 // pred_check
      _
    $region27: #{tpu_custom_call.1} parent=1 // pred_check_branch
      %119 = sbr.rel (0) target = $region29
    $region28: #{tpu_custom_call.1} parent=1 // pred_region
      %121 = dma.done [#allocation4], 128
    $region29: #{tpu_custom_call.1} parent=1 // pred_fallthru
      _
    %122 = vsyncpa [#allocation3], 1
    %123 = vsyncpa [#allocation6], 1
    %124 = vsyncpa [#allocation4], 1

</llo_original>
